<compile_context>
chip_gen: v6e
topology: v6e:2x2x1
jax: 0.10.0
libtpu: 0.0.40
codegen_flags: <defaults>
</compile_context>

<pallas_src>
import functools

import jax
import jax.numpy as jnp
from jax import lax
from jax.experimental import pallas as pl
from jax.experimental.pallas import tpu as pltpu


# ---------------------------------------------------------------------------
# Pass 1: fused RMSNorm + Q/K/V projection (each token touched exactly once).
# ---------------------------------------------------------------------------
def qkv_project_kernel(x_ref, wq_ref, wk_ref, wv_ref, q_ref, k_ref, v_ref,
                       *, heads, dim_head, eps):
    x = x_ref[0].astype(jnp.float32)                        # [TP, D] f32 stats
    d = x.shape[-1]
    # RETRO RMSNorm: x / clamp(||x||_2 * D^-0.5, eps); gain g folded into W.
    ms = jnp.sum(x * x, axis=-1, keepdims=True) * (1.0 / d)
    inv = lax.rsqrt(jnp.maximum(ms, eps * eps))             # single EUP op
    xn = (x * inv).astype(jnp.bfloat16)                     # [TP, D] bf16

    def project(w_ref, out_ref):
        # Full-width matmul across all heads (K = D, N = inner): full MXU use.
        y = jnp.dot(xn, w_ref[...], preferred_element_type=jnp.float32)
        yb = y.astype(jnp.bfloat16)                         # [TP, inner]
        for h in range(heads):                              # static head split
            out_ref[0, h] = yb[:, h * dim_head:(h + 1) * dim_head]

    project(wq_ref, q_ref)   # scale + g already folded into Wq
    project(wk_ref, k_ref)
    project(wv_ref, v_ref)


# ---------------------------------------------------------------------------
# Pass 2: flash attention (online softmax over KV tiles) + fused O-projection.
# ---------------------------------------------------------------------------
def flash_attention_kernel(q_ref, k_ref, v_ref, wo_ref, bo_ref, o_ref,
                           m_scr, l_scr, acc_scr, *, heads, dim_head):
    ki = pl.program_id(2)
    n_kv = pl.num_programs(2)

    @pl.when(ki == 0)
    def _init():
        m_scr[...] = jnp.full_like(m_scr, -jnp.inf)
        l_scr[...] = jnp.zeros_like(l_scr)
        acc_scr[...] = jnp.zeros_like(acc_scr)

    q = q_ref[0]                                            # [H, TQ, dh] bf16
    k = k_ref[0]                                            # [H, TK, dh] bf16
    v = v_ref[0]                                            # [H, TK, dh] bf16

    # Head-batched QK^T (dh contraction is unavoidable per head).
    sim = jnp.einsum('hqd,hkd->hqk', q, k,
                     preferred_element_type=jnp.float32)    # [H, TQ, TK] f32
    m_prev = m_scr[...]                                     # [H, TQ, 1]
    m_new = jnp.maximum(m_prev, jnp.max(sim, axis=-1, keepdims=True))
    alpha = jnp.exp(m_prev - m_new)
    p = jnp.exp(sim - m_new)                                # f32 stats
    l_scr[...] = alpha * l_scr[...] + jnp.sum(p, axis=-1, keepdims=True)
    acc_scr[...] = alpha * acc_scr[...] + jnp.einsum(
        'hqk,hkd->hqd', p.astype(jnp.bfloat16), v,
        preferred_element_type=jnp.float32)
    m_scr[...] = m_new

    @pl.when(ki == n_kv - 1)
    def _finalize():
        acc = acc_scr[...] / l_scr[...]                     # exact 1/l (f32)
        # Concatenate heads once, then a single fused [TQ,inner]x[inner,D].
        o_cat = jnp.concatenate(
            [acc[h].astype(jnp.bfloat16) for h in range(heads)], axis=-1)
        out = jnp.dot(o_cat, wo_ref[...], preferred_element_type=jnp.float32)
        o_ref[0] = (out + bo_ref[0]).astype(o_ref.dtype)


def _pick_tile(n, cap):
    """Largest divisor of n that is <= cap and a multiple of 8.

    Falls back to the full dimension only when no such divisor exists
    (e.g. prime n), which is always block-legal.
    """
    t = min(n, cap)
    while t > 0:
        if n % t == 0 and (t % 8 == 0 or t == n):
            return t
        t -= 1
    return n


def attention_forward(x, g, wq_t, wkv_t, wo_t, bo, *, heads, dim_head,
                      eps=1e-8, tp_cap=512, tq_cap=256, tk_cap=512):
    B, N, D = x.shape
    inner = heads * dim_head
    scale = dim_head ** -0.5

    TP = _pick_tile(N, tp_cap)   # projection seq tile
    TQ = _pick_tile(N, tq_cap)   # query tile
    TK = _pick_tile(N, tk_cap)   # kv tile
    n_p, n_q, n_kv = N // TP, N // TQ, N // TK

    # Host-side weight prep (free): fold softmax scale + RMSNorm gain into the
    # projection weights; bf16 MXU operands; bf16 input stream.
    g_col = g.reshape(D, 1).astype(jnp.float32)
    wq_h = (g_col * wq_t * scale).astype(jnp.bfloat16)            # [D, inner]
    wk_h = (g_col * wkv_t[:, :inner]).astype(jnp.bfloat16)        # [D, inner]
    wv_h = (g_col * wkv_t[:, inner:]).astype(jnp.bfloat16)        # [D, inner]
    wo_h = wo_t.astype(jnp.bfloat16)                              # [inner, D]
    x_bf = x.astype(jnp.bfloat16)
    bo_f = bo.astype(jnp.float32)

    # ---------------- pass 1: RMSNorm + QKV projection ----------------
    proj = functools.partial(qkv_project_kernel, heads=heads,
                             dim_head=dim_head, eps=eps)
    qkv_shape = jax.ShapeDtypeStruct((B, heads, N, dim_head), jnp.bfloat16)
    q, k, v = pl.pallas_call(
        proj,
        out_shape=(qkv_shape, qkv_shape, qkv_shape),
        grid=(B, n_p),
        in_specs=[
            pl.BlockSpec((1, TP, D), lambda b, i: (b, i, 0)),         # x tile
            pl.BlockSpec((D, inner), lambda b, i: (0, 0)),            # Wq (g, scale folded)
            pl.BlockSpec((D, inner), lambda b, i: (0, 0)),            # Wk (g folded)
            pl.BlockSpec((D, inner), lambda b, i: (0, 0)),            # Wv (g folded)
        ],
        out_specs=(
            pl.BlockSpec((1, heads, TP, dim_head), lambda b, i: (b, 0, i, 0)),
            pl.BlockSpec((1, heads, TP, dim_head), lambda b, i: (b, 0, i, 0)),
            pl.BlockSpec((1, heads, TP, dim_head), lambda b, i: (b, 0, i, 0)),
        ),
        compiler_params=pltpu.CompilerParams(
            dimension_semantics=("parallel", "parallel"),
            vmem_limit_bytes=32 * 1024 * 1024),
    )(x_bf, wq_h, wk_h, wv_h)

    # ---------------- pass 2: flash attention + output projection ----------------
    attn = functools.partial(flash_attention_kernel, heads=heads,
                             dim_head=dim_head)
    return pl.pallas_call(
        attn,
        out_shape=jax.ShapeDtypeStruct((B, N, D), x.dtype),
        grid=(B, n_q, n_kv),
        in_specs=[
            pl.BlockSpec((1, heads, TQ, dim_head), lambda b, qi, ki: (b, 0, qi, 0)),  # Q
            pl.BlockSpec((1, heads, TK, dim_head), lambda b, qi, ki: (b, 0, ki, 0)),  # K
            pl.BlockSpec((1, heads, TK, dim_head), lambda b, qi, ki: (b, 0, ki, 0)),  # V
            pl.BlockSpec((inner, D), lambda b, qi, ki: (0, 0)),                       # Wo
            pl.BlockSpec((1, D), lambda b, qi, ki: (0, 0)),                           # bias
        ],
        out_specs=pl.BlockSpec((1, TQ, D), lambda b, qi, ki: (b, qi, 0)),
        scratch_shapes=[
            pltpu.VMEM((heads, TQ, 1), jnp.float32),          # running max
            pltpu.VMEM((heads, TQ, 1), jnp.float32),          # running sum
            pltpu.VMEM((heads, TQ, dim_head), jnp.float32),   # output accum
        ],
        compiler_params=pltpu.CompilerParams(
            dimension_semantics=("parallel", "parallel", "arbitrary"),
            vmem_limit_bytes=32 * 1024 * 1024),
    )(q, k, v, wo_h, bo_f)


def attention_reference(x, g, wq_t, wkv_t, wo_t, bo, *, heads, dim_head, eps=1e-8):
    """Plain-JAX f32 mirror of the PyTorch forward (default args)."""
    B, N, D = x.shape
    inner = heads * dim_head
    scale = dim_head ** -0.5
    norm = jnp.linalg.norm(x, axis=-1, keepdims=True) * (D ** -0.5)
    xn = x / jnp.maximum(norm, eps) * g[0]
    q = xn @ wq_t
    kv = xn @ wkv_t
    k, v = kv[..., :inner], kv[..., inner:]

    def split_heads(t):
        return t.reshape(B, N, heads, dim_head).transpose(0, 2, 1, 3)

    q, k, v = map(split_heads, (q, k, v))
    q = q * scale
    sim = jnp.einsum('bhid,bhjd->bhij', q, k)
    attn = jax.nn.softmax(sim, axis=-1)
    out = jnp.einsum('bhij,bhjd->bhid', attn, v)
    out = out.transpose(0, 2, 1, 3).reshape(B, N, inner)
    return out @ wo_t + bo[0]


if __name__ == "__main__":
    B, N, D = 2, 8, 32
    heads, dim_head = 2, 16
    inner = heads * dim_head

    key = jax.random.PRNGKey(0)
    kx, kg, kq, kkv, ko, kb = jax.random.split(key, 6)

    x = jax.random.normal(kx, (B, N, D), dtype=jnp.float32)
    g = 1.0 + 0.1 * jax.random.normal(kg, (1, D), dtype=jnp.float32)   # RMSNorm gain
    wq_t = 0.05 * jax.random.normal(kq, (D, inner), dtype=jnp.float32)
    wkv_t = 0.05 * jax.random.normal(kkv, (D, 2 * inner), dtype=jnp.float32)
    wo_t = 0.05 * jax.random.normal(ko, (inner, D), dtype=jnp.float32)
    bo = 0.01 * jax.random.normal(kb, (1, D), dtype=jnp.float32)

    out = attention_forward(x, g, wq_t, wkv_t, wo_t, bo,
                            heads=heads, dim_head=dim_head)
    out = jax.block_until_ready(out)

    ref = attention_reference(x, g, wq_t, wkv_t, wo_t, bo,
                              heads=heads, dim_head=dim_head)
    assert out.shape == (B, N, D)
    # bf16 MXU operands / bf16 input stream -> looser tolerance vs f32 ref.
    assert jnp.allclose(out, ref, rtol=2e-2, atol=2e-2), "mismatch vs reference"

    print("KERNEL_OK")
</pallas_src>

<mosaic_0001>
module attributes {stable_mosaic.version = 11 : i64} {
  func.func @qkv_project_kernel(%arg0: i32, %arg1: i32, %arg2: memref<1x8x32xbf16, #tpu.memory_space<vmem>>, %arg3: memref<32x32xbf16, #tpu.memory_space<vmem>>, %arg4: memref<32x32xbf16, #tpu.memory_space<vmem>>, %arg5: memref<32x32xbf16, #tpu.memory_space<vmem>>, %arg6: memref<1x2x8x16xbf16, #tpu.memory_space<vmem>>, %arg7: memref<1x2x8x16xbf16, #tpu.memory_space<vmem>>, %arg8: memref<1x2x8x16xbf16, #tpu.memory_space<vmem>>) attributes {dimension_semantics = [#tpu.dimension_semantics<parallel>, #tpu.dimension_semantics<parallel>], iteration_bounds = array<i64: 2, 1>, scalar_prefetch = 0 : i64, scratch_operands = 0 : i64, tpu.core_type = #tpu.core_type<tc>, window_params = [{transform_indices = @transform_0, window_bounds = array<i64: 1, 8, 32>}, {pipeline_mode = #tpu.pipeline_mode<synchronous>, transform_indices = @transform_1, window_bounds = array<i64: 32, 32>}, {pipeline_mode = #tpu.pipeline_mode<synchronous>, transform_indices = @transform_2, window_bounds = array<i64: 32, 32>}, {pipeline_mode = #tpu.pipeline_mode<synchronous>, transform_indices = @transform_3, window_bounds = array<i64: 32, 32>}, {transform_indices = @transform_4, window_bounds = array<i64: 1, 2, 8, 16>}, {transform_indices = @transform_5, window_bounds = array<i64: 1, 2, 8, 16>}, {transform_indices = @transform_6, window_bounds = array<i64: 1, 2, 8, 16>}]} {
    %c0 = arith.constant 0 : index
    %c0_0 = arith.constant 0 : index
    %c0_1 = arith.constant 0 : index
    %0 = vector.load %arg2[%c0, %c0_0, %c0_1] : memref<1x8x32xbf16, #tpu.memory_space<vmem>>, vector<1x8x32xbf16>
    %1 = vector.shape_cast %0 : vector<1x8x32xbf16> to vector<8x32xbf16>
    %2 = arith.extf %1 : vector<8x32xbf16> to vector<8x32xf32>
    %3 = arith.mulf %2, %2 : vector<8x32xf32>
    %cst = arith.constant dense<0.000000e+00> : vector<8xf32>
    %4 = vector.multi_reduction <add>, %3, %cst [1] : vector<8x32xf32> to vector<8xf32>
    %5 = vector.shape_cast %4 : vector<8xf32> to vector<8x1xf32>
    %cst_2 = arith.constant 3.125000e-02 : f32
    %6 = vector.broadcast %cst_2 : f32 to vector<8x1xf32>
    %7 = arith.mulf %5, %6 : vector<8x1xf32>
    %cst_3 = arith.constant 1.000000e-16 : f32
    %8 = vector.broadcast %cst_3 : f32 to vector<8x1xf32>
    %9 = arith.maximumf %7, %8 : vector<8x1xf32>
    %10 = math.rsqrt %9 : vector<8x1xf32>
    %11 = vector.broadcast %10 : vector<8x1xf32> to vector<8x32xf32>
    %12 = arith.mulf %2, %11 : vector<8x32xf32>
    %13 = arith.truncf %12 : vector<8x32xf32> to vector<8x32xbf16>
    %c0_4 = arith.constant 0 : index
    %c0_5 = arith.constant 0 : index
    %14 = vector.load %arg3[%c0_4, %c0_5] : memref<32x32xbf16, #tpu.memory_space<vmem>>, vector<32x32xbf16>
    %cst_6 = arith.constant dense<0.000000e+00> : vector<8x32xf32>
    %15 = tpu.matmul %13, %14, %cst_6 {dimension_numbers = #tpu.dot_dimension_numbers<[1], [0], [0], [1], [0, 0, 1, 1], [], []>} : vector<8x32xbf16>, vector<32x32xbf16>, vector<8x32xf32> -> vector<8x32xf32>
    %16 = arith.truncf %15 : vector<8x32xf32> to vector<8x32xbf16>
    %17 = vector.extract_strided_slice %16 {offsets = [0, 0], sizes = [8, 16], strides = [1, 1]} : vector<8x32xbf16> to vector<8x16xbf16>
    %c0_7 = arith.constant 0 : index
    %c0_8 = arith.constant 0 : index
    %c0_9 = arith.constant 0 : index
    %c0_10 = arith.constant 0 : index
    %18 = vector.load %arg6[%c0_7, %c0_8, %c0_9, %c0_10] : memref<1x2x8x16xbf16, #tpu.memory_space<vmem>>, vector<1x1x8x16xbf16>
    %19 = vector.shape_cast %18 : vector<1x1x8x16xbf16> to vector<8x16xbf16>
    %20 = vector.shape_cast %17 : vector<8x16xbf16> to vector<1x1x8x16xbf16>
    tpu.vector_store %arg6[%c0_7, %c0_8, %c0_9, %c0_10], %20 {strides = array<i32>} : memref<1x2x8x16xbf16, #tpu.memory_space<vmem>>, vector<1x1x8x16xbf16>,
    %21 = vector.extract_strided_slice %16 {offsets = [0, 16], sizes = [8, 16], strides = [1, 1]} : vector<8x32xbf16> to vector<8x16xbf16>
    %c0_11 = arith.constant 0 : index
    %c1 = arith.constant 1 : index
    %c0_12 = arith.constant 0 : index
    %c0_13 = arith.constant 0 : index
    %22 = vector.load %arg6[%c0_11, %c1, %c0_12, %c0_13] : memref<1x2x8x16xbf16, #tpu.memory_space<vmem>>, vector<1x1x8x16xbf16>
    %23 = vector.shape_cast %22 : vector<1x1x8x16xbf16> to vector<8x16xbf16>
    %24 = vector.shape_cast %21 : vector<8x16xbf16> to vector<1x1x8x16xbf16>
    tpu.vector_store %arg6[%c0_11, %c1, %c0_12, %c0_13], %24 {strides = array<i32>} : memref<1x2x8x16xbf16, #tpu.memory_space<vmem>>, vector<1x1x8x16xbf16>,
    %c0_14 = arith.constant 0 : index
    %c0_15 = arith.constant 0 : index
    %25 = vector.load %arg4[%c0_14, %c0_15] : memref<32x32xbf16, #tpu.memory_space<vmem>>, vector<32x32xbf16>
    %cst_16 = arith.constant dense<0.000000e+00> : vector<8x32xf32>
    %26 = tpu.matmul %13, %25, %cst_16 {dimension_numbers = #tpu.dot_dimension_numbers<[1], [0], [0], [1], [0, 0, 1, 1], [], []>} : vector<8x32xbf16>, vector<32x32xbf16>, vector<8x32xf32> -> vector<8x32xf32>
    %27 = arith.truncf %26 : vector<8x32xf32> to vector<8x32xbf16>
    %28 = vector.extract_strided_slice %27 {offsets = [0, 0], sizes = [8, 16], strides = [1, 1]} : vector<8x32xbf16> to vector<8x16xbf16>
    %c0_17 = arith.constant 0 : index
    %c0_18 = arith.constant 0 : index
    %c0_19 = arith.constant 0 : index
    %c0_20 = arith.constant 0 : index
    %29 = vector.load %arg7[%c0_17, %c0_18, %c0_19, %c0_20] : memref<1x2x8x16xbf16, #tpu.memory_space<vmem>>, vector<1x1x8x16xbf16>
    %30 = vector.shape_cast %29 : vector<1x1x8x16xbf16> to vector<8x16xbf16>
    %31 = vector.shape_cast %28 : vector<8x16xbf16> to vector<1x1x8x16xbf16>
    tpu.vector_store %arg7[%c0_17, %c0_18, %c0_19, %c0_20], %31 {strides = array<i32>} : memref<1x2x8x16xbf16, #tpu.memory_space<vmem>>, vector<1x1x8x16xbf16>,
    %32 = vector.extract_strided_slice %27 {offsets = [0, 16], sizes = [8, 16], strides = [1, 1]} : vector<8x32xbf16> to vector<8x16xbf16>
    %c0_21 = arith.constant 0 : index
    %c1_22 = arith.constant 1 : index
    %c0_23 = arith.constant 0 : index
    %c0_24 = arith.constant 0 : index
    %33 = vector.load %arg7[%c0_21, %c1_22, %c0_23, %c0_24] : memref<1x2x8x16xbf16, #tpu.memory_space<vmem>>, vector<1x1x8x16xbf16>
    %34 = vector.shape_cast %33 : vector<1x1x8x16xbf16> to vector<8x16xbf16>
    %35 = vector.shape_cast %32 : vector<8x16xbf16> to vector<1x1x8x16xbf16>
    tpu.vector_store %arg7[%c0_21, %c1_22, %c0_23, %c0_24], %35 {strides = array<i32>} : memref<1x2x8x16xbf16, #tpu.memory_space<vmem>>, vector<1x1x8x16xbf16>,
    %c0_25 = arith.constant 0 : index
    %c0_26 = arith.constant 0 : index
    %36 = vector.load %arg5[%c0_25, %c0_26] : memref<32x32xbf16, #tpu.memory_space<vmem>>, vector<32x32xbf16>
    %cst_27 = arith.constant dense<0.000000e+00> : vector<8x32xf32>
    %37 = tpu.matmul %13, %36, %cst_27 {dimension_numbers = #tpu.dot_dimension_numbers<[1], [0], [0], [1], [0, 0, 1, 1], [], []>} : vector<8x32xbf16>, vector<32x32xbf16>, vector<8x32xf32> -> vector<8x32xf32>
    %38 = arith.truncf %37 : vector<8x32xf32> to vector<8x32xbf16>
    %39 = vector.extract_strided_slice %38 {offsets = [0, 0], sizes = [8, 16], strides = [1, 1]} : vector<8x32xbf16> to vector<8x16xbf16>
    %c0_28 = arith.constant 0 : index
    %c0_29 = arith.constant 0 : index
    %c0_30 = arith.constant 0 : index
    %c0_31 = arith.constant 0 : index
    %40 = vector.load %arg8[%c0_28, %c0_29, %c0_30, %c0_31] : memref<1x2x8x16xbf16, #tpu.memory_space<vmem>>, vector<1x1x8x16xbf16>
    %41 = vector.shape_cast %40 : vector<1x1x8x16xbf16> to vector<8x16xbf16>
    %42 = vector.shape_cast %39 : vector<8x16xbf16> to vector<1x1x8x16xbf16>
    tpu.vector_store %arg8[%c0_28, %c0_29, %c0_30, %c0_31], %42 {strides = array<i32>} : memref<1x2x8x16xbf16, #tpu.memory_space<vmem>>, vector<1x1x8x16xbf16>,
    %43 = vector.extract_strided_slice %38 {offsets = [0, 16], sizes = [8, 16], strides = [1, 1]} : vector<8x32xbf16> to vector<8x16xbf16>
    %c0_32 = arith.constant 0 : index
    %c1_33 = arith.constant 1 : index
    %c0_34 = arith.constant 0 : index
    %c0_35 = arith.constant 0 : index
    %44 = vector.load %arg8[%c0_32, %c1_33, %c0_34, %c0_35] : memref<1x2x8x16xbf16, #tpu.memory_space<vmem>>, vector<1x1x8x16xbf16>
    %45 = vector.shape_cast %44 : vector<1x1x8x16xbf16> to vector<8x16xbf16>
    %46 = vector.shape_cast %43 : vector<8x16xbf16> to vector<1x1x8x16xbf16>
    tpu.vector_store %arg8[%c0_32, %c1_33, %c0_34, %c0_35], %46 {strides = array<i32>} : memref<1x2x8x16xbf16, #tpu.memory_space<vmem>>, vector<1x1x8x16xbf16>,
    return
  }
  func.func @transform_0(%arg0: i32, %arg1: i32) -> (i32, i32, i32) {
    %c0_i32 = arith.constant 0 : i32
    %c0_i32_0 = arith.constant 0 : i32
    return %arg0, %arg1, %c0_i32 : i32, i32, i32
  }
  func.func @transform_1(%arg0: i32, %arg1: i32) -> (i32, i32) {
    %c0_i32 = arith.constant 0 : i32
    %c0_i32_0 = arith.constant 0 : i32
    %c0_i32_1 = arith.constant 0 : i32
    return %c0_i32, %c0_i32_0 : i32, i32
  }
  func.func @transform_2(%arg0: i32, %arg1: i32) -> (i32, i32) {
    %c0_i32 = arith.constant 0 : i32
    %c0_i32_0 = arith.constant 0 : i32
    %c0_i32_1 = arith.constant 0 : i32
    return %c0_i32, %c0_i32_0 : i32, i32
  }
  func.func @transform_3(%arg0: i32, %arg1: i32) -> (i32, i32) {
    %c0_i32 = arith.constant 0 : i32
    %c0_i32_0 = arith.constant 0 : i32
    %c0_i32_1 = arith.constant 0 : i32
    return %c0_i32, %c0_i32_0 : i32, i32
  }
  func.func @transform_4(%arg0: i32, %arg1: i32) -> (i32, i32, i32, i32) {
    %c0_i32 = arith.constant 0 : i32
    %c0_i32_0 = arith.constant 0 : i32
    %c0_i32_1 = arith.constant 0 : i32
    return %arg0, %c0_i32, %arg1, %c0_i32_0 : i32, i32, i32, i32
  }
  func.func @transform_5(%arg0: i32, %arg1: i32) -> (i32, i32, i32, i32) {
    %c0_i32 = arith.constant 0 : i32
    %c0_i32_0 = arith.constant 0 : i32
    %c0_i32_1 = arith.constant 0 : i32
    return %arg0, %c0_i32, %arg1, %c0_i32_0 : i32, i32, i32, i32
  }
  func.func @transform_6(%arg0: i32, %arg1: i32) -> (i32, i32, i32, i32) {
    %c0_i32 = arith.constant 0 : i32
    %c0_i32_0 = arith.constant 0 : i32
    %c0_i32_1 = arith.constant 0 : i32
    return %arg0, %c0_i32, %arg1, %c0_i32_0 : i32, i32, i32, i32
  }
}

</mosaic_0001>

<llo_original>
// kernel: tpu_custom_call.1
$region0: #{tpu_custom_call.1}
  #allocation0 [shape = 'u32[]', space=smem, size = 0x4, offset = 0x4, fixed_abs, tag = 'smem constant byte address 0x4 - core index']
  #allocation1 [shape = 'u32[144,128]{1,0:T(1,128)}', space=vmem, size = 0x12000, scoped, tag = 'internal scratch']
  %s0 = inlined_call_operand.hbm [shape: bf16[2,8,32], index: 0, kind: input, shape index: {}]
  %s1 = inlined_call_operand.hbm [shape: bf16[32,32], index: 1, kind: input, shape index: {}]
  %s2 = inlined_call_operand.hbm [shape: bf16[32,32], index: 2, kind: input, shape index: {}]
  %s3 = inlined_call_operand.hbm [shape: bf16[32,32], index: 3, kind: input, shape index: {}]
  %s4 = inlined_call_operand.hbm [shape: bf16[2,2,8,16], index: 4, kind: output, shape index: {0}]
  %s5 = inlined_call_operand.hbm [shape: bf16[2,2,8,16], index: 5, kind: output, shape index: {1}]
  %s6 = inlined_call_operand.hbm [shape: bf16[2,2,8,16], index: 6, kind: output, shape index: {2}]
  %7 = xla_tuple %s4, %s5, %s6
  %s8 = sld [smem:[#allocation0]]
  $region81: #{tpu_custom_call.1} parent=0
    _
  %s10 = ssub.s32 1, %s8
  %s11 = scalar_select 0, %s10, %s8
  $region1: #{tpu_custom_call.1} parent=0
    #allocation2 [shape = 'u8[4096]{0}', space=vmem, size = 0x1000, scoped, tag = 'input window, operand 0']
    #allocation3 [shape = 's32[2]{0}', space=sflag, size = 0x8, scoped, tag = 'scoped memory for tpu_custom_call.1']
    #allocation4 [shape = 's32[2]{0}', space=sflag, size = 0x8, scoped, tag = 'scoped memory for tpu_custom_call.1']
    #allocation5 [shape = 'u8[8192]{0}', space=vmem, size = 0x2000, scoped, tag = 'input window, operand 1, single buffered']
    #allocation6 [shape = 's32[1]{0}', space=sflag, size = 0x4, scoped, tag = 'scoped memory for tpu_custom_call.1']
    #allocation7 [shape = 'u8[8192]{0}', space=vmem, size = 0x2000, scoped, tag = 'input window, operand 2, single buffered']
    #allocation8 [shape = 'u8[8192]{0}', space=vmem, size = 0x2000, scoped, tag = 'input window, operand 3, single buffered']
    #allocation9 [shape = 's32[1]{0}', space=sflag, size = 0x4, scoped, tag = 'scoped memory for tpu_custom_call.1']
    #allocation10 [shape = 'u8[8192]{0}', space=vmem, size = 0x2000, scoped, tag = 'output window, operand 0']
    #allocation11 [shape = 'u8[8192]{0}', space=vmem, size = 0x2000, scoped, tag = 'output window, operand 1']
    #allocation12 [shape = 's32[2]{0}', space=sflag, size = 0x8, scoped, tag = 'scoped memory for tpu_custom_call.1']
    #allocation13 [shape = 'u8[8192]{0}', space=vmem, size = 0x2000, scoped, tag = 'output window, operand 2']
    %12 = vsyncpa [#allocation3], 0
    %s13 = scalar_lea.sflag [#allocation3], 1
    %14 = vsyncpa %s13, 0
    %15 = vsyncpa [#allocation6], 0
    %16 = vsyncpa [#allocation9], 0
    %17 = vsyncpa [#allocation4], 0
    %s18 = scalar_lea.sflag [#allocation4], 1
    %19 = vsyncpa %s18, 0
    %20 = vsyncpa [#allocation12], 0
    %s21 = scalar_lea.sflag [#allocation12], 1
    %22 = vsyncpa %s21, 0
    loop: start=0, step=1, limit=4
    $region2: #{tpu_custom_call.1} parent=1 // loop_pre_header
      _
    $region3: #{tpu_custom_call.1} parent=1 // loop_header
      %s24 = sphi 0, %s28
      %p25 = scmp.ge.s32.totalorder %s24, 4
      %s31 = sphi 0, %s43
      %s32 = sphi 0, %s39
      %s33 = sphi 0, %s31
      %s34 = sphi 0, %s32
      %s35 = sphi 0, %s33
      %s36 = sphi 0, %s34
      %s48 = sphi 0, %s50
      %s51 = sphi 0, %s48
      %s52 = sphi 0, %s51
      %s68 = sphi 0, %s52
      %s72 = sphi 0, %s72
      %s74 = sphi 0, %s72
      %s75 = sphi 0, %s74
      %s89 = sphi 0, %s75
      %s93 = sphi 0, %s93
      %s95 = sphi 0, %s93
      %s96 = sphi 0, %s95
      %s110 = sphi 0, %s96
      %s114 = sphi 0, %s114
      %s116 = sphi 0, %s114
      %s117 = sphi 0, %s116
      %s131 = sphi 0, %s117
      %s139 = sphi 0, %s141
      %s142 = sphi 0, %s139
      %s143 = sphi 0, %s142
      %s159 = sphi 0, %s143
      %s167 = sphi 0, %s169
      %s170 = sphi 0, %s167
      %s171 = sphi 0, %s170
      %s187 = sphi 0, %s171
      %s195 = sphi 0, %s197
      %s198 = sphi 0, %s195
      %s199 = sphi 0, %s198
      %s215 = sphi 0, %s199
    $region4: #{tpu_custom_call.1} parent=1 // loop_header_branch
      %27 = sbr.rel (%p25) target = $region8
    $region5: #{tpu_custom_call.1} parent=1 // loop_body
      %s29 = ssub.s32 %s24, 1
      %s30 = ssub.s32 %s24, 2
      %s37 = sadd.s32 1, %s32
      %p38 = scmp.ge.s32.totalorder %s37, 1
      %s39 = scalar_select %p38, 0, %s37
      %s40 = sadd.s32 1, %s31
      %s41 = scalar_select %p38, %s40, %s31
      %p42 = scmp.ge.s32.totalorder %s41, 2
      %s43 = scalar_select %p42, 0, %s41
      %s44 = ssub.s32 %s31, %s43
      %s45 = ssub.s32 %s32, %s39
      %s46 = sor.u32 %s44, %s45
      %p47 = scmp.eq.s32.totalorder %s46, 0
      %s49 = sadd.s32 %s48, 1
      %s50 = scalar_select %p47, %s48, %s49
      %p53 = pneg %p47
      %p54 = scmp.eq.s32.totalorder %s24, 1
      %p55 = por %p53, %p54
      %p56 = scmp.ne.s32.totalorder %s48, %s51
      %p57 = scmp.eq.s32.totalorder %s24, 0
      %p58 = por %p56, %p57
      %p59 = scmp.ne.s32.totalorder %s48, %s51
      %p60 = scmp.eq.s32.totalorder %s29, 1
      %p61 = por %p59, %p60
      %p62 = scmp.ne.s32.totalorder %s51, %s52
      %p63 = scmp.eq.s32.totalorder %s29, 0
      %p64 = por %p62, %p63
      %p65 = scmp.ne.s32.totalorder %s51, %s52
      %p66 = scmp.eq.s32.totalorder %s30, 1
      %p67 = por %p65, %p66
      %p69 = scmp.ne.s32.totalorder %s52, %s68
      %p70 = scmp.eq.s32.totalorder %s30, 0
      %p71 = por %p69, %p70
      %s73 = sadd.s32 %s72, 1
      %p76 = scmp.eq.s32.totalorder %s24, 1
      %p77 = scmp.ne.s32.totalorder %s72, %s74
      %p78 = scmp.eq.s32.totalorder %s24, 0
      %p79 = por %p77, %p78
      %p80 = scmp.ne.s32.totalorder %s72, %s74
      %p81 = scmp.eq.s32.totalorder %s29, 1
      %p82 = por %p80, %p81
      %p83 = scmp.ne.s32.totalorder %s74, %s75
      %p84 = scmp.eq.s32.totalorder %s29, 0
      %p85 = por %p83, %p84
      %p86 = scmp.ne.s32.totalorder %s74, %s75
      %p87 = scmp.eq.s32.totalorder %s30, 1
      %p88 = por %p86, %p87
      %p90 = scmp.ne.s32.totalorder %s75, %s89
      %p91 = scmp.eq.s32.totalorder %s30, 0
      %p92 = por %p90, %p91
      %s94 = sadd.s32 %s93, 1
      %p97 = scmp.eq.s32.totalorder %s24, 1
      %p98 = scmp.ne.s32.totalorder %s93, %s95
      %p99 = scmp.eq.s32.totalorder %s24, 0
      %p100 = por %p98, %p99
      %p101 = scmp.ne.s32.totalorder %s93, %s95
      %p102 = scmp.eq.s32.totalorder %s29, 1
      %p103 = por %p101, %p102
      %p104 = scmp.ne.s32.totalorder %s95, %s96
      %p105 = scmp.eq.s32.totalorder %s29, 0
      %p106 = por %p104, %p105
      %p107 = scmp.ne.s32.totalorder %s95, %s96
      %p108 = scmp.eq.s32.totalorder %s30, 1
      %p109 = por %p107, %p108
      %p111 = scmp.ne.s32.totalorder %s96, %s110
      %p112 = scmp.eq.s32.totalorder %s30, 0
      %p113 = por %p111, %p112
      %s115 = sadd.s32 %s114, 1
      %p118 = scmp.eq.s32.totalorder %s24, 1
      %p119 = scmp.ne.s32.totalorder %s114, %s116
      %p120 = scmp.eq.s32.totalorder %s24, 0
      %p121 = por %p119, %p120
      %p122 = scmp.ne.s32.totalorder %s114, %s116
      %p123 = scmp.eq.s32.totalorder %s29, 1
      %p124 = por %p122, %p123
      %p125 = scmp.ne.s32.totalorder %s116, %s117
      %p126 = scmp.eq.s32.totalorder %s29, 0
      %p127 = por %p125, %p126
      %p128 = scmp.ne.s32.totalorder %s116, %s117
      %p129 = scmp.eq.s32.totalorder %s30, 1
      %p130 = por %p128, %p129
      %p132 = scmp.ne.s32.totalorder %s117, %s131
      %p133 = scmp.eq.s32.totalorder %s30, 0
      %p134 = por %p132, %p133
      %s135 = ssub.s32 %s31, %s43
      %s136 = ssub.s32 %s32, %s39
      %s137 = sor.u32 %s135, %s136
      %p138 = scmp.eq.s32.totalorder %s137, 0
      %s140 = sadd.s32 %s139, 1
      %s141 = scalar_select %p138, %s139, %s140
      %p144 = pneg %p138
      %p145 = scmp.eq.s32.totalorder %s24, 1
      %p146 = por %p144, %p145
      %p147 = scmp.ne.s32.totalorder %s139, %s142
      %p148 = scmp.eq.s32.totalorder %s24, 0
      %p149 = por %p147, %p148
      %p150 = scmp.ne.s32.totalorder %s139, %s142
      %p151 = scmp.eq.s32.totalorder %s29, 1
      %p152 = por %p150, %p151
      %p153 = scmp.ne.s32.totalorder %s142, %s143
      %p154 = scmp.eq.s32.totalorder %s29, 0
      %p155 = por %p153, %p154
      %p156 = scmp.ne.s32.totalorder %s142, %s143
      %p157 = scmp.eq.s32.totalorder %s30, 1
      %p158 = por %p156, %p157
      %p160 = scmp.ne.s32.totalorder %s143, %s159
      %p161 = scmp.eq.s32.totalorder %s30, 0
      %p162 = por %p160, %p161
      %s163 = ssub.s32 %s31, %s43
      %s164 = ssub.s32 %s32, %s39
      %s165 = sor.u32 %s163, %s164
      %p166 = scmp.eq.s32.totalorder %s165, 0
      %s168 = sadd.s32 %s167, 1
      %s169 = scalar_select %p166, %s167, %s168
      %p172 = pneg %p166
      %p173 = scmp.eq.s32.totalorder %s24, 1
      %p174 = por %p172, %p173
      %p175 = scmp.ne.s32.totalorder %s167, %s170
      %p176 = scmp.eq.s32.totalorder %s24, 0
      %p177 = por %p175, %p176
      %p178 = scmp.ne.s32.totalorder %s167, %s170
      %p179 = scmp.eq.s32.totalorder %s29, 1
      %p180 = por %p178, %p179
      %p181 = scmp.ne.s32.totalorder %s170, %s171
      %p182 = scmp.eq.s32.totalorder %s29, 0
      %p183 = por %p181, %p182
      %p184 = scmp.ne.s32.totalorder %s170, %s171
      %p185 = scmp.eq.s32.totalorder %s30, 1
      %p186 = por %p184, %p185
      %p188 = scmp.ne.s32.totalorder %s171, %s187
      %p189 = scmp.eq.s32.totalorder %s30, 0
      %p190 = por %p188, %p189
      %s191 = ssub.s32 %s31, %s43
      %s192 = ssub.s32 %s32, %s39
      %s193 = sor.u32 %s191, %s192
      %p194 = scmp.eq.s32.totalorder %s193, 0
      %s196 = sadd.s32 %s195, 1
      %s197 = scalar_select %p194, %s195, %s196
      %p200 = pneg %p194
      %p201 = scmp.eq.s32.totalorder %s24, 1
      %p202 = por %p200, %p201
      %p203 = scmp.ne.s32.totalorder %s195, %s198
      %p204 = scmp.eq.s32.totalorder %s24, 0
      %p205 = por %p203, %p204
      %p206 = scmp.ne.s32.totalorder %s195, %s198
      %p207 = scmp.eq.s32.totalorder %s29, 1
      %p208 = por %p206, %p207
      %p209 = scmp.ne.s32.totalorder %s198, %s199
      %p210 = scmp.eq.s32.totalorder %s29, 0
      %p211 = por %p209, %p210
      %p212 = scmp.ne.s32.totalorder %s198, %s199
      %p213 = scmp.eq.s32.totalorder %s30, 1
      %p214 = por %p212, %p213
      %p216 = scmp.ne.s32.totalorder %s199, %s215
      %p217 = scmp.eq.s32.totalorder %s30, 0
      %p218 = por %p216, %p217
      %p219 = scmp.le.s32.totalorder 1, %s24
      %p220 = scmp.lt.s32.totalorder %s24, 3
      %p221 = pnand %p219, %p220
      %p222 = pneg %p221
      // Predicated region
      $region9: #{tpu_custom_call.1} parent=5 // pred_check
        _
      $region10: #{tpu_custom_call.1} parent=5 // pred_check_branch
        %224 = sbr.rel (%p221) target = $region12
      $region11: #{tpu_custom_call.1} parent=5 // pred_region
        %s225 = ssub.s32 %s24, 1
        // Predicated region
        $region13: #{tpu_custom_call.1} parent=11 // pred_check
          %p226 = pneg %p85
        $region14: #{tpu_custom_call.1} parent=11 // pred_check_branch
          %228 = sbr.rel (%p226) target = $region16
        $region15: #{tpu_custom_call.1} parent=11 // pred_region
          %s230 = ssub.s32 256, 256
          %231 = vsyncadd [#allocation6], %s230
          %s232 = sshll.u32 [#allocation5], 4
          %s233 = int_to_ptr.vmem [resolvable:$true] %s232
          %238 = dma.hbm_to_vmem [thread:$0]  %s1, 256, %s233, [#allocation6], 64, 64, 4
        $region16: #{tpu_custom_call.1} parent=11 // pred_fallthru
          _
        // Predicated region
        $region17: #{tpu_custom_call.1} parent=11 // pred_check
          %p239 = pneg %p106
        $region18: #{tpu_custom_call.1} parent=11 // pred_check_branch
          %241 = sbr.rel (%p239) target = $region20
        $region19: #{tpu_custom_call.1} parent=11 // pred_region
          %s243 = ssub.s32 256, 256
          %244 = vsyncadd [#allocation6], %s243
          %s245 = sshll.u32 [#allocation7], 4
          %s246 = int_to_ptr.vmem [resolvable:$true] %s245
          %251 = dma.hbm_to_vmem [thread:$0]  %s2, 256, %s246, [#allocation6], 64, 64, 4
        $region20: #{tpu_custom_call.1} parent=11 // pred_fallthru
          _
        // Predicated region
        $region21: #{tpu_custom_call.1} parent=11 // pred_check
          %p252 = pneg %p127
        $region22: #{tpu_custom_call.1} parent=11 // pred_check_branch
          %254 = sbr.rel (%p252) target = $region24
        $region23: #{tpu_custom_call.1} parent=11 // pred_region
          %s256 = ssub.s32 256, 256
          %257 = vsyncadd [#allocation9], %s256
          %s258 = sshll.u32 [#allocation8], 4
          %s259 = int_to_ptr.vmem [resolvable:$true] %s258
          %264 = dma.hbm_to_vmem [thread:$0]  %s3, 256, %s259, [#allocation9], 64, 64, 4
        $region24: #{tpu_custom_call.1} parent=11 // pred_fallthru
          _
      $region12: #{tpu_custom_call.1} parent=5 // pred_fallthru
        _
      %p265 = scmp.lt.s32.totalorder %s24, 2
      // Predicated region
      $region25: #{tpu_custom_call.1} parent=5 // pred_check
        %p266 = pneg %p265
      $region26: #{tpu_custom_call.1} parent=5 // pred_check_branch
        %268 = sbr.rel (%p266) target = $region28
      $region27: #{tpu_custom_call.1} parent=5 // pred_region
        // Predicated region
        $region29: #{tpu_custom_call.1} parent=27 // pred_check
          %p269 = pneg %p58
        $region30: #{tpu_custom_call.1} parent=27 // pred_check_branch
          %271 = sbr.rel (%p269) target = $region32
        $region31: #{tpu_custom_call.1} parent=27 // pred_region
          %s272 = sand.u32 %s48, 1
          %s273 = scalar_lea.sflag [#allocation3], %s272
          %s274 = sand.u32 %s48, 1
          %s275 = smul.addr %s274, 4
          %s276 = scalar_lea.vmem [#allocation2], %s275
          %s278 = ssub.s32 64, 64
          %279 = vsyncadd %s273, %s278
          %s280 = sadd.s32 %s32, %s31
          %s281 = smul.addr %s280, 64
          %s282 = scalar_lea.hbm %s0, %s281
          %s284 = sshll.u32 %s276, 4
          %s285 = int_to_ptr.vmem [resolvable:$true] %s284
          %287 = dma.hbm_to_vmem [thread:$0]  %s282, 64, %s285, %s273
        $region32: #{tpu_custom_call.1} parent=27 // pred_fallthru
          _
      $region28: #{tpu_custom_call.1} parent=5 // pred_fallthru
        _
      %p288 = scmp.le.s32.totalorder 1, %s24
      %p289 = scmp.lt.s32.totalorder %s24, 3
      %p290 = pnand %p288, %p289
      %p291 = pneg %p290
      // Predicated region
      $region33: #{tpu_custom_call.1} parent=5 // pred_check
        _
      $region34: #{tpu_custom_call.1} parent=5 // pred_check_branch
        %293 = sbr.rel (%p290) target = $region36
      $region35: #{tpu_custom_call.1} parent=5 // pred_region
        %s294 = ssub.s32 %s24, 1
        %s295 = sand.u32 %s51, 1
        %s296 = scalar_lea.sflag [#allocation3], %s295
        %s297 = sand.u32 %s51, 1
        %s298 = smul.addr %s297, 4
        %s299 = scalar_lea.vmem [#allocation2], %s298
        // Predicated region
        $region37: #{tpu_custom_call.1} parent=35 // pred_check
          %p300 = pneg %p64
        $region38: #{tpu_custom_call.1} parent=35 // pred_check_branch
          %302 = sbr.rel (%p300) target = $region40
        $region39: #{tpu_custom_call.1} parent=35 // pred_region
          %303 = dma.done %s296, 64
        $region40: #{tpu_custom_call.1} parent=35 // pred_fallthru
          _
        // Predicated region
        $region41: #{tpu_custom_call.1} parent=35 // pred_check
          %p304 = pneg %p85
        $region42: #{tpu_custom_call.1} parent=35 // pred_check_branch
          %306 = sbr.rel (%p304) target = $region44
        $region43: #{tpu_custom_call.1} parent=35 // pred_region
          %307 = dma.done [#allocation6], 256
        $region44: #{tpu_custom_call.1} parent=35 // pred_fallthru
          _
        // Predicated region
        $region45: #{tpu_custom_call.1} parent=35 // pred_check
          %p308 = pneg %p106
        $region46: #{tpu_custom_call.1} parent=35 // pred_check_branch
          %310 = sbr.rel (%p308) target = $region48
        $region47: #{tpu_custom_call.1} parent=35 // pred_region
          %311 = dma.done [#allocation6], 256
        $region48: #{tpu_custom_call.1} parent=35 // pred_fallthru
          _
        // Predicated region
        $region49: #{tpu_custom_call.1} parent=35 // pred_check
          %p312 = pneg %p127
        $region50: #{tpu_custom_call.1} parent=35 // pred_check_branch
          %314 = sbr.rel (%p312) target = $region52
        $region51: #{tpu_custom_call.1} parent=35 // pred_region
          %315 = dma.done [#allocation9], 256
        $region52: #{tpu_custom_call.1} parent=35 // pred_fallthru
          _
        %s316 = sand.u32 %s51, 1
        %s317 = scalar_lea.sflag [#allocation3], %s316
        %s318 = sand.u32 %s51, 1
        %s319 = smul.addr %s318, 4
        %s320 = scalar_lea.vmem [#allocation2], %s319
        %p321 = pneg %p64
        %p322 = pneg %p61
        %p323 = pneg %p85
        %p324 = pneg %p82
        %p325 = pneg %p106
        %p326 = pneg %p103
        %p327 = pneg %p127
        %p328 = pneg %p124
        %p329 = pneg %p155
        %p330 = pneg %p152
        %s331 = sand.u32 %s142, 1
        %s332 = scalar_lea.sflag [#allocation4], %s331
        %s333 = sand.u32 %s142, 1
        %s334 = smul.addr %s333, 8
        %s335 = scalar_lea.vmem [#allocation10], %s334
        %p336 = pneg %p183
        %p337 = pneg %p180
        %s338 = sand.u32 %s29, 1
        %s339 = scalar_lea.sflag [#allocation12], %s338
        %s340 = sand.u32 %s170, 1
        %s341 = smul.addr %s340, 8
        %s342 = scalar_lea.vmem [#allocation11], %s341
        %p343 = pneg %p211
        %p344 = pneg %p208
        %s345 = sand.u32 %s29, 1
        %s346 = scalar_lea.sflag [#allocation12], %s345
        %s347 = sand.u32 %s198, 1
        %s348 = smul.addr %s347, 8
        %s349 = scalar_lea.vmem [#allocation13], %s348
        %v351 = vld [vmem:[%s299] sm:$0xf]
        %v352 = vunpack.c.l.bf16 %v351
        %v353 = vmul.f32 %v352, %v352
        %vm354 = vcmask 261120
        %v355 = vsel %vm354, %v353, 0.0
        %356 = vadd.xlane.f32.xlu0 %v355
        %v357 = vpop.xlane.xlu0 %356
        %v358 = vmul.f32 %v357, 0.03125
        %v359 = vmax.f32 %v358, 1e-16
        %v360 = vrsqrt.pop %v359
        %v361 = vmul.f32 %v352, %v360
        %v362 = vpack.c.bf16 %v361, %v361
        %v363 = vld [vmem:[#allocation5] sm:$0xf]
        %v364 = vld [vmem:[#allocation5 + $0x4] sm:$0xf]
        %v365 = vld [vmem:[#allocation5 + $0x8] sm:$0xf]
        %v366 = vld [vmem:[#allocation5 + $0xc] sm:$0xf]
        %v371 = vunpack.c.l.b16 %v363
        %v372 = vunpack.c.l.b16 %v364
        %v373 = vunpack.c.l.b16 %v365
        %v374 = vunpack.c.l.b16 %v366
        %v375 = vpack.c.b16 %v372, %v371
        %v376 = vpack.c.b16 %v374, %v373
        %v380 = vsel %vm354, %v362, 0
        %382 = vmatprep.subr.bf16.mxu0 0
        %383 = vmatpush1.bf16.msra.mxu0 0
        %384 = vmatprep.subr.bf16.mxu0 0
        %385 = vmatpush1.bf16.msra.mxu0 0
        %386 = vmatprep.subr.bf16.mxu0 0
        %387 = vmatpush1.bf16.msra.mxu0 0
        %388 = vmatprep.subr.bf16.mxu0 0
        %389 = vmatpush1.bf16.msra.mxu0 0
        %390 = vmatprep.subr.bf16.mxu0 0
        %391 = vmatpush1.bf16.msra.mxu0 0
        %392 = vmatprep.subr.bf16.mxu0 0
        %393 = vmatpush1.bf16.msra.mxu0 0
        %394 = vmatprep.subr.bf16.mxu0 0
        %395 = vmatpush1.bf16.msra.mxu0 %v376
        %396 = vmatprep.subr.bf16.mxu0 0
        %397 = vmatpush1.bf16.msra.mxu0 %v375
        %398 = vmatprep.subr.bf16.mxu0 0
        %399 = vmatpush2.bf16.msra.mxu0 0
        %400 = vmatprep.subr.bf16.mxu0 0
        %401 = vmatpush2.bf16.msra.mxu0 0
        %402 = vmatprep.subr.bf16.mxu0 0
        %403 = vmatpush2.bf16.msra.mxu0 0
        %404 = vmatprep.subr.bf16.mxu0 0
        %405 = vmatpush2.bf16.msra.mxu0 0
        %406 = vmatprep.subr.bf16.mxu0 0
        %407 = vmatpush2.bf16.msra.mxu0 0
        %408 = vmatprep.subr.bf16.mxu0 0
        %409 = vmatpush2.bf16.msra.mxu0 0
        %410 = vmatprep.subr.bf16.mxu0 0
        %411 = vmatpush2.bf16.msra.mxu0 0
        %412 = vmatprep.subr.bf16.mxu0 0
        %413 = vmatpush2.bf16.msra.mxu0 0
        %414 = vmatprep.mubr.bf16.mxu0 0
        %415 = vmatmul.mubr.bf16.gmra.mxu0 %v380
        %v416 = vpop.f32.mrf.mxu0
        %v417 = vadd.f32 0.0, %v416
        %v418 = vpop.f32.mrf.mxu0
        %v419 = vpop.f32.mrf.mxu0
        %v420 = vpop.f32.mrf.mxu0
        %421 = vdwg.mxu0
        %v422 = vpack.c.bf16 %v417, %v417
        %vm423 = vcmask 125952
        %424 = vst.msk [vmem:[%s335] sm:$0xf] %vm423, %v422
        %v426 = vunpack.c.l.b16 %v422
        %v427 = vpack.c.b16 %v426, %v426
        %428 = vrot.lane.b32.xlu0 %v427, 112
        %v429 = vpop.permute.xlu0 %428
        %s431 = scalar_lea.vmem %s335, 4 [#allocation10]
        %432 = vst.msk [vmem:[%s431] sm:$0xf] %vm423, %v429
        %v433 = vld [vmem:[#allocation7] sm:$0xf]
        %v434 = vld [vmem:[#allocation7 + $0x4] sm:$0xf]
        %v435 = vld [vmem:[#allocation7 + $0x8] sm:$0xf]
        %v436 = vld [vmem:[#allocation7 + $0xc] sm:$0xf]
        %v441 = vunpack.c.l.b16 %v433
        %v442 = vunpack.c.l.b16 %v434
        %v443 = vunpack.c.l.b16 %v435
        %v444 = vunpack.c.l.b16 %v436
        %v445 = vpack.c.b16 %v442, %v441
        %v446 = vpack.c.b16 %v444, %v443
        %449 = vmatprep.subr.bf16.mxu0 0
        %450 = vmatpush1.bf16.msra.mxu0 0
        %451 = vmatprep.subr.bf16.mxu0 0
        %452 = vmatpush1.bf16.msra.mxu0 0
        %453 = vmatprep.subr.bf16.mxu0 0
        %454 = vmatpush1.bf16.msra.mxu0 0
        %455 = vmatprep.subr.bf16.mxu0 0
        %456 = vmatpush1.bf16.msra.mxu0 0
        %457 = vmatprep.subr.bf16.mxu0 0
        %458 = vmatpush1.bf16.msra.mxu0 0
        %459 = vmatprep.subr.bf16.mxu0 0
        %460 = vmatpush1.bf16.msra.mxu0 0
        %461 = vmatprep.subr.bf16.mxu0 0
        %462 = vmatpush1.bf16.msra.mxu0 %v446
        %463 = vmatprep.subr.bf16.mxu0 0
        %464 = vmatpush1.bf16.msra.mxu0 %v445
        %465 = vmatprep.subr.bf16.mxu0 0
        %466 = vmatpush2.bf16.msra.mxu0 0
        %467 = vmatprep.subr.bf16.mxu0 0
        %468 = vmatpush2.bf16.msra.mxu0 0
        %469 = vmatprep.subr.bf16.mxu0 0
        %470 = vmatpush2.bf16.msra.mxu0 0
        %471 = vmatprep.subr.bf16.mxu0 0
        %472 = vmatpush2.bf16.msra.mxu0 0
        %473 = vmatprep.subr.bf16.mxu0 0
        %474 = vmatpush2.bf16.msra.mxu0 0
        %475 = vmatprep.subr.bf16.mxu0 0
        %476 = vmatpush2.bf16.msra.mxu0 0
        %477 = vmatprep.subr.bf16.mxu0 0
        %478 = vmatpush2.bf16.msra.mxu0 0
        %479 = vmatprep.subr.bf16.mxu0 0
        %480 = vmatpush2.bf16.msra.mxu0 0
        %481 = vmatprep.mubr.bf16.mxu0 0
        %482 = vmatmul.mubr.bf16.gmra.mxu0 %v380
        %v483 = vpop.f32.mrf.mxu0
        %v484 = vadd.f32 0.0, %v483
        %v485 = vpop.f32.mrf.mxu0
        %v486 = vpop.f32.mrf.mxu0
        %v487 = vpop.f32.mrf.mxu0
        %488 = vdwg.mxu0
        %v489 = vpack.c.bf16 %v484, %v484
        %490 = vst.msk [vmem:[%s342] sm:$0xf] %vm423, %v489
        %v492 = vunpack.c.l.b16 %v489
        %v493 = vpack.c.b16 %v492, %v492
        %494 = vrot.lane.b32.xlu0 %v493, 112
        %v495 = vpop.permute.xlu0 %494
        %s497 = scalar_lea.vmem %s342, 4 [#allocation11]
        %498 = vst.msk [vmem:[%s497] sm:$0xf] %vm423, %v495
        %v499 = vld [vmem:[#allocation8] sm:$0xf]
        %v500 = vld [vmem:[#allocation8 + $0x4] sm:$0xf]
        %v501 = vld [vmem:[#allocation8 + $0x8] sm:$0xf]
        %v502 = vld [vmem:[#allocation8 + $0xc] sm:$0xf]
        %v507 = vunpack.c.l.b16 %v499
        %v508 = vunpack.c.l.b16 %v500
        %v509 = vunpack.c.l.b16 %v501
        %v510 = vunpack.c.l.b16 %v502
        %v511 = vpack.c.b16 %v508, %v507
        %v512 = vpack.c.b16 %v510, %v509
        %515 = vmatprep.subr.bf16.mxu0 0
        %516 = vmatpush1.bf16.msra.mxu0 0
        %517 = vmatprep.subr.bf16.mxu0 0
        %518 = vmatpush1.bf16.msra.mxu0 0
        %519 = vmatprep.subr.bf16.mxu0 0
        %520 = vmatpush1.bf16.msra.mxu0 0
        %521 = vmatprep.subr.bf16.mxu0 0
        %522 = vmatpush1.bf16.msra.mxu0 0
        %523 = vmatprep.subr.bf16.mxu0 0
        %524 = vmatpush1.bf16.msra.mxu0 0
        %525 = vmatprep.subr.bf16.mxu0 0
        %526 = vmatpush1.bf16.msra.mxu0 0
        %527 = vmatprep.subr.bf16.mxu0 0
        %528 = vmatpush1.bf16.msra.mxu0 %v512
        %529 = vmatprep.subr.bf16.mxu0 0
        %530 = vmatpush1.bf16.msra.mxu0 %v511
        %531 = vmatprep.subr.bf16.mxu0 0
        %532 = vmatpush2.bf16.msra.mxu0 0
        %533 = vmatprep.subr.bf16.mxu0 0
        %534 = vmatpush2.bf16.msra.mxu0 0
        %535 = vmatprep.subr.bf16.mxu0 0
        %536 = vmatpush2.bf16.msra.mxu0 0
        %537 = vmatprep.subr.bf16.mxu0 0
        %538 = vmatpush2.bf16.msra.mxu0 0
        %539 = vmatprep.subr.bf16.mxu0 0
        %540 = vmatpush2.bf16.msra.mxu0 0
        %541 = vmatprep.subr.bf16.mxu0 0
        %542 = vmatpush2.bf16.msra.mxu0 0
        %543 = vmatprep.subr.bf16.mxu0 0
        %544 = vmatpush2.bf16.msra.mxu0 0
        %545 = vmatprep.subr.bf16.mxu0 0
        %546 = vmatpush2.bf16.msra.mxu0 0
        %547 = vmatprep.mubr.bf16.mxu0 0
        %548 = vmatmul.mubr.bf16.gmra.mxu0 %v380
        %v549 = vpop.f32.mrf.mxu0
        %v550 = vadd.f32 0.0, %v549
        %v551 = vpop.f32.mrf.mxu0
        %v552 = vpop.f32.mrf.mxu0
        %v553 = vpop.f32.mrf.mxu0
        %554 = vdwg.mxu0
        %v555 = vpack.c.bf16 %v550, %v550
        %556 = vst.msk [vmem:[%s349] sm:$0xf] %vm423, %v555
        %v558 = vunpack.c.l.b16 %v555
        %v559 = vpack.c.b16 %v558, %v558
        %560 = vrot.lane.b32.xlu0 %v559, 112
        %v561 = vpop.permute.xlu0 %560
        %s563 = scalar_lea.vmem %s349, 4 [#allocation13]
        %564 = vst.msk [vmem:[%s563] sm:$0xf] %vm423, %v561
        %s565 = sand.u32 %s142, 1
        %s566 = scalar_lea.sflag [#allocation4], %s565
        %s567 = sand.u32 %s142, 1
        %s568 = smul.addr %s567, 8
        %s569 = scalar_lea.vmem [#allocation10], %s568
        %s570 = sand.u32 %s29, 1
        %s571 = scalar_lea.sflag [#allocation12], %s570
        %s572 = sand.u32 %s170, 1
        %s573 = smul.addr %s572, 8
        %s574 = scalar_lea.vmem [#allocation11], %s573
        %s575 = sand.u32 %s29, 1
        %s576 = scalar_lea.sflag [#allocation12], %s575
        %s577 = sand.u32 %s198, 1
        %s578 = smul.addr %s577, 8
        %s579 = scalar_lea.vmem [#allocation13], %s578
        // Predicated region
        $region53: #{tpu_custom_call.1} parent=35 // pred_check
          %p580 = pneg %p152
        $region54: #{tpu_custom_call.1} parent=35 // pred_check_branch
          %582 = sbr.rel (%p580) target = $region56
        $region55: #{tpu_custom_call.1} parent=35 // pred_region
          %s584 = ssub.s32 128, 128
          %585 = vsyncadd %s566, %s584
          %s586 = smul.addr %s33, 2
          %s587 = sadd.s32 %s34, %s586
          %s588 = smul.addr %s587, 64
          %s589 = scalar_lea.hbm %s4, %s588
          %s590 = sshll.u32 %s569, 4
          %s591 = int_to_ptr.vmem [resolvable:$true] %s590
          %596 = dma.vmem_to_hbm [thread:$0]  %s591, 128, %s589, %s566, 64, 64, 4
        $region56: #{tpu_custom_call.1} parent=35 // pred_fallthru
          _
        // Predicated region
        $region57: #{tpu_custom_call.1} parent=35 // pred_check
          %p597 = pneg %p180
        $region58: #{tpu_custom_call.1} parent=35 // pred_check_branch
          %599 = sbr.rel (%p597) target = $region60
        $region59: #{tpu_custom_call.1} parent=35 // pred_region
          %s601 = ssub.s32 128, 128
          %602 = vsyncadd %s571, %s601
          %s603 = smul.addr %s33, 2
          %s604 = sadd.s32 %s34, %s603
          %s605 = smul.addr %s604, 64
          %s606 = scalar_lea.hbm %s5, %s605
          %s607 = sshll.u32 %s574, 4
          %s608 = int_to_ptr.vmem [resolvable:$true] %s607
          %613 = dma.vmem_to_hbm [thread:$0]  %s608, 128, %s606, %s571, 64, 64, 4
        $region60: #{tpu_custom_call.1} parent=35 // pred_fallthru
          _
        // Predicated region
        $region61: #{tpu_custom_call.1} parent=35 // pred_check
          %p614 = pneg %p208
        $region62: #{tpu_custom_call.1} parent=35 // pred_check_branch
          %616 = sbr.rel (%p614) target = $region64
        $region63: #{tpu_custom_call.1} parent=35 // pred_region
          %s618 = ssub.s32 128, 128
          %619 = vsyncadd %s576, %s618
          %s620 = smul.addr %s33, 2
          %s621 = sadd.s32 %s34, %s620
          %s622 = smul.addr %s621, 64
          %s623 = scalar_lea.hbm %s6, %s622
          %s624 = sshll.u32 %s579, 4
          %s625 = int_to_ptr.vmem [resolvable:$true] %s624
          %630 = dma.vmem_to_hbm [thread:$0]  %s625, 128, %s623, %s576, 64, 64, 4
        $region64: #{tpu_custom_call.1} parent=35 // pred_fallthru
          _
      $region36: #{tpu_custom_call.1} parent=5 // pred_fallthru
        _
      %p631 = scmp.le.s32.totalorder 2, %s24
      // Predicated region
      $region65: #{tpu_custom_call.1} parent=5 // pred_check
        %p632 = pneg %p631
      $region66: #{tpu_custom_call.1} parent=5 // pred_check_branch
        %634 = sbr.rel (%p632) target = $region68
      $region67: #{tpu_custom_call.1} parent=5 // pred_region
        %s635 = ssub.s32 %s24, 2
        // Predicated region
        $region69: #{tpu_custom_call.1} parent=67 // pred_check
          %p636 = pneg %p158
        $region70: #{tpu_custom_call.1} parent=67 // pred_check_branch
          %638 = sbr.rel (%p636) target = $region72
        $region71: #{tpu_custom_call.1} parent=67 // pred_region
          %s639 = sand.u32 %s143, 1
          %s640 = scalar_lea.sflag [#allocation4], %s639
          %s641 = sand.u32 %s143, 1
          %s642 = smul.addr %s641, 8
          %s643 = scalar_lea.vmem [#allocation10], %s642
          %644 = dma.done %s640, 128
        $region72: #{tpu_custom_call.1} parent=67 // pred_fallthru
          _
        // Predicated region
        $region73: #{tpu_custom_call.1} parent=67 // pred_check
          %p645 = pneg %p186
        $region74: #{tpu_custom_call.1} parent=67 // pred_check_branch
          %647 = sbr.rel (%p645) target = $region76
        $region75: #{tpu_custom_call.1} parent=67 // pred_region
          %s648 = sand.u32 %s30, 1
          %s649 = scalar_lea.sflag [#allocation12], %s648
          %s650 = sand.u32 %s171, 1
          %s651 = smul.addr %s650, 8
          %s652 = scalar_lea.vmem [#allocation11], %s651
          %653 = dma.done %s649, 128
        $region76: #{tpu_custom_call.1} parent=67 // pred_fallthru
          _
        // Predicated region
        $region77: #{tpu_custom_call.1} parent=67 // pred_check
          %p654 = pneg %p214
        $region78: #{tpu_custom_call.1} parent=67 // pred_check_branch
          %656 = sbr.rel (%p654) target = $region80
        $region79: #{tpu_custom_call.1} parent=67 // pred_region
          %s657 = sand.u32 %s30, 1
          %s658 = scalar_lea.sflag [#allocation12], %s657
          %s659 = sand.u32 %s199, 1
          %s660 = smul.addr %s659, 8
          %s661 = scalar_lea.vmem [#allocation13], %s660
          %662 = dma.done %s658, 128
        $region80: #{tpu_custom_call.1} parent=67 // pred_fallthru
          _
      $region68: #{tpu_custom_call.1} parent=5 // pred_fallthru
        _
    $region6: #{tpu_custom_call.1} parent=1 // loop_footer
      %s28 = sadd.s32 1, %s24
    $region7: #{tpu_custom_call.1} parent=1 // loop_footer_branch
      %23 = sbr.rel target = $region3
    $region8: #{tpu_custom_call.1} parent=1 // loop_exit
      _
    %663 = vsyncpa [#allocation3], 1
    %s664 = scalar_lea.sflag [#allocation3], 1
    %665 = vsyncpa %s664, 1
    %666 = vsyncpa [#allocation6], 1
    %667 = vsyncpa [#allocation9], 1
    %668 = vsyncpa [#allocation4], 1
    %s669 = scalar_lea.sflag [#allocation4], 1
    %670 = vsyncpa %s669, 1
    %671 = vsyncpa [#allocation12], 1
    %s672 = scalar_lea.sflag [#allocation12], 1
    %673 = vsyncpa %s672, 1

</llo_original>
